<compile_context>
chip_gen: v5e
topology: v5e:2x2
jax: 0.10.0
libtpu: 0.0.40
codegen_flags: <defaults>
</compile_context>

<pallas_src>
import functools
import math

import jax
import jax.numpy as jnp
from jax.experimental import pallas as pl
from jax.experimental.pallas import tpu as pltpu


def _round_up(x, m):
    return ((x + m - 1) // m) * m


def _pick_vmem_limit():
    """Chip-aware scoped-VMEM limit: ~3/4 of physical, capped at 100 MiB."""
    cap = None
    try:
        info = pltpu.get_tpu_info()
        cap = getattr(info, "vmem_capacity_bytes", None)
    except Exception:
        cap = None
    if not cap:
        cap = 64 * 1024 * 1024          # conservative fallback (v7x physical)
    limit = int(cap) * 3 // 4
    return max(32 * 1024 * 1024, min(limit, 100 * 1024 * 1024))


def _fused_phase_kernel(x_cur_ref, x_ovl_ref, w_ref, b_ref, o_ref, *, k_sub, tl):
    # x_cur_ref: (1, C_in, TL)            current lane-dense activation tile
    # x_ovl_ref: (1, C_in, OVL)           first OVL lanes of the NEXT tile
    # w_ref:     (K_sub, S*C_out, C_in)   fused per-tap weights (all phases stacked)
    # b_ref:     (S*C_out, 1)             phase-replicated bias (f32)
    # o_ref:     (1, S*C_out, TL)         all-phase output tile (x.dtype)
    win = jnp.concatenate([x_cur_ref[0], x_ovl_ref[0]], axis=-1)   # (C_in, TL+OVL)
    acc = None
    for m in range(k_sub):                 # static unroll, K_sub is tiny
        off = k_sub - 1 - m                # static lane shift inside VMEM window
        part = jnp.dot(w_ref[m], win[:, off:off + tl],
                       preferred_element_type=jnp.float32)
        acc = part if acc is None else acc + part
    o_ref[0] = (acc + b_ref[...]).astype(o_ref.dtype)


def equalized_conv_transpose1d(x, weight, bias, *, stride=1, padding=0,
                               compute_dtype=jnp.float32, lane_tile=2048):
    """Matches torch.nn.functional.conv_transpose1d(x, weight*scale, bias, stride, padding).

    x:      (N, C_in, L_in)
    weight: (C_in, C_out, K)   (PyTorch conv_transpose1d layout)
    bias:   (C_out,) or None
    compute_dtype: matmul operand dtype (f32 for parity, bf16 for v6e/v7x speed);
                   accumulation is always f32.  Note bf16 casts x once up front.
    """
    N, C_in, L_in = x.shape
    _, C_out, K = weight.shape
    S = int(stride)
    scale = math.sqrt(2.0) / math.sqrt(C_in)

    K_sub = -(-K // S)                   # taps per phase = ceil(K / stride)
    SC_out = S * C_out                   # fused (all-phase) output rows
    Q = L_in + K_sub - 1                 # per-phase (full-convolution) length

    op_bytes = jnp.dtype(compute_dtype).itemsize
    out_bytes = jnp.dtype(x.dtype).itemsize

    # Overlap window between consecutive q-tiles (lane-dense, >= K_sub-1).
    OVL = max(128, _round_up(max(K_sub - 1, 1), 128))

    # Lane-dense length tiling (multiple of 128), clamped to a chip-aware VMEM
    # budget (double-buffered activation tile + output tile per lane).
    vmem_limit = _pick_vmem_limit()
    per_lane = 2 * (C_in * op_bytes + SC_out * out_bytes) + 1
    tl_budget = max(OVL, ((vmem_limit // 2) // per_lane) // 128 * 128)
    TL = min(int(lane_tile), _round_up(Q, 128), tl_budget)
    TL = _round_up(max(TL, OVL), OVL)

    Q_pad = _round_up(Q, TL)
    n_q = Q_pad // TL

    # ---- glue: fused weight (K_sub, S*C_out, C_in), zero-padded taps.
    # w_fused[m, p*C_out + co, ci] = scale * weight[ci, co, m*S + p]  (0 if >= K)
    w_scaled = weight.astype(jnp.float32) * jnp.float32(scale)
    w_padded = jnp.pad(w_scaled, ((0, 0), (0, 0), (0, K_sub * S - K)))
    w_r = w_padded.reshape(C_in, C_out, K_sub, S)
    w_fused = jnp.transpose(w_r, (2, 3, 1, 0)).reshape(K_sub, SC_out, C_in)
    w_fused = w_fused.astype(compute_dtype)

    if bias is None:
        bias = jnp.zeros((C_out,), dtype=jnp.float32)
    b_fused = jnp.tile(bias.astype(jnp.float32), (S,)).reshape(SC_out, 1)

    # ---- glue: single zero-pad of x (no im2col slab).  x_pad[j] = x[j-(K_sub-1)].
    xf = x.astype(compute_dtype)
    total_len = Q_pad + TL               # room for the last tile's overlap fetch
    x_pad = jnp.pad(xf, ((0, 0), (0, 0),
                         (K_sub - 1, total_len - (K_sub - 1) - L_in)))

    kernel = functools.partial(_fused_phase_kernel, k_sub=K_sub, tl=TL)

    y_k = pl.pallas_call(
        kernel,
        out_shape=jax.ShapeDtypeStruct((N, SC_out, Q_pad), x.dtype),
        grid_spec=pltpu.PrefetchScalarGridSpec(
            num_scalar_prefetch=0,
            grid=(N, n_q),
            in_specs=[
                # current activation tile
                pl.BlockSpec((1, C_in, TL), lambda n, q: (n, 0, q)),
                # small overlap window at the start of the next tile (same array)
                pl.BlockSpec((1, C_in, OVL),
                             lambda n, q: (n, 0, (q + 1) * (TL // OVL))),
                # fused all-phase weight (resident, constant block)
                pl.BlockSpec((K_sub, SC_out, C_in), lambda n, q: (0, 0, 0)),
                # phase-replicated bias
                pl.BlockSpec((SC_out, 1), lambda n, q: (0, 0)),
            ],
            out_specs=pl.BlockSpec((1, SC_out, TL), lambda n, q: (n, 0, q)),
        ),
        compiler_params=pltpu.CompilerParams(
            dimension_semantics=("parallel", "parallel"),
            vmem_limit_bytes=vmem_limit,
        ),
    )(x_pad, x_pad, w_fused, b_fused)

    # ---- glue: interleave phases (t = q*S + p) and apply the padding crop.
    # Already x.dtype, so this pass moves the minimum number of bytes.
    y = y_k[:, :, :Q].reshape(N, S, C_out, Q)
    y = jnp.transpose(y, (0, 2, 3, 1)).reshape(N, C_out, Q * S)
    L_out = (L_in - 1) * S + K - 2 * padding
    return y[:, :, padding:padding + L_out]


def _reference(x, weight, bias, *, stride, padding):
    """Pure-JAX reference using input-dilated convolution (matches PyTorch)."""
    C_in, C_out, K = weight.shape
    scale = math.sqrt(2.0) / math.sqrt(C_in)
    w = (weight * scale).transpose(1, 0, 2)[:, :, ::-1]            # (C_out, C_in, K)
    pad = K - 1 - padding
    y = jax.lax.conv_general_dilated(
        x, w,
        window_strides=(1,),
        padding=[(pad, pad)],
        lhs_dilation=(stride,),
        rhs_dilation=(1,),
        dimension_numbers=("NCH", "OIH", "NCH"),
    )
    if bias is not None:
        y = y + bias[None, :, None]
    return y


def _check(x, weight, bias, *, stride, padding, compute_dtype=jnp.float32,
           lane_tile=2048, atol=1e-4, rtol=1e-4, tag=""):
    ref = _reference(x, weight, bias, stride=stride, padding=padding)
    out = equalized_conv_transpose1d(x, weight, bias, stride=stride,
                                     padding=padding,
                                     compute_dtype=compute_dtype,
                                     lane_tile=lane_tile)
    out = jax.block_until_ready(out)
    assert out.shape == ref.shape, (tag, out.shape, ref.shape)
    assert jnp.allclose(out, ref, atol=atol, rtol=rtol), f"{tag} mismatch vs reference"


if __name__ == "__main__":
    key = jax.random.PRNGKey(0)
    kx, kw, kb, kx2 = jax.random.split(key, 4)

    # Small shapes consistent with the module's forward: x is (N, C_in, L_in)
    N, C_in, C_out, L_in = 2, 4, 8, 16
    K, stride, padding = 4, 2, 1
    x = jax.random.normal(kx, (N, C_in, L_in), dtype=jnp.float32)
    weight = jax.random.normal(kw, (C_in, C_out, K), dtype=jnp.float32)
    bias = jax.random.normal(kb, (C_out,), dtype=jnp.float32) * 0.1

    # f32 operands: tight parity check
    _check(x, weight, bias, stride=stride, padding=padding, tag="f32 s=2")

    # stride=1 path (K_sub = K taps, no interleave)
    _check(x, weight, bias, stride=1, padding=0, tag="f32 s=1")

    # bf16 operands / f32 accumulation (the v6e/v7x fast path): loose tolerance
    _check(x, weight, bias, stride=stride, padding=padding,
           compute_dtype=jnp.bfloat16, atol=5e-2, rtol=5e-2, tag="bf16 s=2")

    # Multi-tile grid (forces lane_tile=128 so the cross-tile overlap path runs)
    x2 = jax.random.normal(kx2, (1, C_in, 300), dtype=jnp.float32)
    weight2 = jax.random.normal(kw, (C_in, C_out, 5), dtype=jnp.float32)
    _check(x2, weight2, bias, stride=3, padding=2, lane_tile=128,
           tag="f32 s=3 multi-tile")

    print("KERNEL_OK")
</pallas_src>

<mosaic_0001>
module attributes {stable_mosaic.version = 11 : i64} {
  func.func @_fused_phase_kernel(%arg0: i32, %arg1: i32, %arg2: memref<1x4x128xf32, #tpu.memory_space<vmem>>, %arg3: memref<1x4x128xf32, #tpu.memory_space<vmem>>, %arg4: memref<2x16x4xf32, #tpu.memory_space<vmem>>, %arg5: memref<16x1xf32, #tpu.memory_space<vmem>>, %arg6: memref<1x16x128xf32, #tpu.memory_space<vmem>>) attributes {dimension_semantics = [#tpu.dimension_semantics<parallel>, #tpu.dimension_semantics<parallel>], iteration_bounds = array<i64: 2, 1>, scalar_prefetch = 0 : i64, scratch_operands = 0 : i64, tpu.core_type = #tpu.core_type<tc>, window_params = [{transform_indices = @transform_0, window_bounds = array<i64: 1, 4, 128>}, {transform_indices = @transform_1, window_bounds = array<i64: 1, 4, 128>}, {pipeline_mode = #tpu.pipeline_mode<synchronous>, transform_indices = @transform_2, window_bounds = array<i64: 2, 16, 4>}, {pipeline_mode = #tpu.pipeline_mode<synchronous>, transform_indices = @transform_3, window_bounds = array<i64: 16, 1>}, {transform_indices = @transform_4, window_bounds = array<i64: 1, 16, 128>}]} {
    %c0 = arith.constant 0 : index
    %c0_0 = arith.constant 0 : index
    %c0_1 = arith.constant 0 : index
    %0 = vector.load %arg2[%c0, %c0_0, %c0_1] : memref<1x4x128xf32, #tpu.memory_space<vmem>>, vector<1x4x128xf32>
    %1 = vector.shape_cast %0 : vector<1x4x128xf32> to vector<4x128xf32>
    %c0_2 = arith.constant 0 : index
    %c0_3 = arith.constant 0 : index
    %c0_4 = arith.constant 0 : index
    %2 = vector.load %arg3[%c0_2, %c0_3, %c0_4] : memref<1x4x128xf32, #tpu.memory_space<vmem>>, vector<1x4x128xf32>
    %3 = vector.shape_cast %2 : vector<1x4x128xf32> to vector<4x128xf32>
    %4 = tpu.concatenate %1, %3 in 1 : vector<4x128xf32>, vector<4x128xf32> -> vector<4x256xf32>
    %c0_5 = arith.constant 0 : index
    %c0_6 = arith.constant 0 : index
    %c0_7 = arith.constant 0 : index
    %5 = vector.load %arg4[%c0_5, %c0_6, %c0_7] : memref<2x16x4xf32, #tpu.memory_space<vmem>>, vector<1x16x4xf32>
    %6 = vector.shape_cast %5 : vector<1x16x4xf32> to vector<16x4xf32>
    %7 = vector.extract_strided_slice %4 {offsets = [0, 1], sizes = [4, 128], strides = [1, 1]} : vector<4x256xf32> to vector<4x128xf32>
    %cst = arith.constant dense<0.000000e+00> : vector<16x128xf32>
    %8 = tpu.matmul %6, %7, %cst {dimension_numbers = #tpu.dot_dimension_numbers<[1], [0], [0], [1], [0, 0, 1, 1], [], []>} : vector<16x4xf32>, vector<4x128xf32>, vector<16x128xf32> -> vector<16x128xf32>
    %c1 = arith.constant 1 : index
    %c0_8 = arith.constant 0 : index
    %c0_9 = arith.constant 0 : index
    %9 = vector.load %arg4[%c1, %c0_8, %c0_9] : memref<2x16x4xf32, #tpu.memory_space<vmem>>, vector<1x16x4xf32>
    %10 = vector.shape_cast %9 : vector<1x16x4xf32> to vector<16x4xf32>
    %11 = vector.extract_strided_slice %4 {offsets = [0, 0], sizes = [4, 128], strides = [1, 1]} : vector<4x256xf32> to vector<4x128xf32>
    %cst_10 = arith.constant dense<0.000000e+00> : vector<16x128xf32>
    %12 = tpu.matmul %10, %11, %cst_10 {dimension_numbers = #tpu.dot_dimension_numbers<[1], [0], [0], [1], [0, 0, 1, 1], [], []>} : vector<16x4xf32>, vector<4x128xf32>, vector<16x128xf32> -> vector<16x128xf32>
    %13 = arith.addf %8, %12 : vector<16x128xf32>
    %c0_11 = arith.constant 0 : index
    %c0_12 = arith.constant 0 : index
    %14 = vector.load %arg5[%c0_11, %c0_12] : memref<16x1xf32, #tpu.memory_space<vmem>>, vector<16x1xf32>
    %15 = vector.broadcast %14 : vector<16x1xf32> to vector<16x128xf32>
    %16 = arith.addf %13, %15 : vector<16x128xf32>
    %c0_13 = arith.constant 0 : index
    %c0_14 = arith.constant 0 : index
    %c0_15 = arith.constant 0 : index
    %17 = vector.load %arg6[%c0_13, %c0_14, %c0_15] : memref<1x16x128xf32, #tpu.memory_space<vmem>>, vector<1x16x128xf32>
    %18 = vector.shape_cast %17 : vector<1x16x128xf32> to vector<16x128xf32>
    %19 = vector.shape_cast %16 : vector<16x128xf32> to vector<1x16x128xf32>
    tpu.vector_store %arg6[%c0_13, %c0_14, %c0_15], %19 {strides = array<i32>} : memref<1x16x128xf32, #tpu.memory_space<vmem>>, vector<1x16x128xf32>,
    return
  }
  func.func @transform_0(%arg0: i32, %arg1: i32) -> (i32, i32, i32) {
    %c0_i32 = arith.constant 0 : i32
    %c0_i32_0 = arith.constant 0 : i32
    return %arg0, %c0_i32, %arg1 : i32, i32, i32
  }
  func.func @transform_1(%arg0: i32, %arg1: i32) -> (i32, i32, i32) {
    %c1_i32 = arith.constant 1 : i32
    %0 = arith.addi %arg1, %c1_i32 : i32
    %c1_i32_0 = arith.constant 1 : i32
    %1 = arith.muli %0, %c1_i32_0 : i32
    %c0_i32 = arith.constant 0 : i32
    %c0_i32_1 = arith.constant 0 : i32
    return %arg0, %c0_i32, %1 : i32, i32, i32
  }
  func.func @transform_2(%arg0: i32, %arg1: i32) -> (i32, i32, i32) {
    %c0_i32 = arith.constant 0 : i32
    %c0_i32_0 = arith.constant 0 : i32
    %c0_i32_1 = arith.constant 0 : i32
    %c0_i32_2 = arith.constant 0 : i32
    return %c0_i32, %c0_i32_0, %c0_i32_1 : i32, i32, i32
  }
  func.func @transform_3(%arg0: i32, %arg1: i32) -> (i32, i32) {
    %c0_i32 = arith.constant 0 : i32
    %c0_i32_0 = arith.constant 0 : i32
    %c0_i32_1 = arith.constant 0 : i32
    return %c0_i32, %c0_i32_0 : i32, i32
  }
  func.func @transform_4(%arg0: i32, %arg1: i32) -> (i32, i32, i32) {
    %c0_i32 = arith.constant 0 : i32
    %c0_i32_0 = arith.constant 0 : i32
    return %arg0, %c0_i32, %arg1 : i32, i32, i32
  }
}

</mosaic_0001>

<llo_original>
// kernel: tpu_custom_call.1
$region0: #{tpu_custom_call.1}
  #allocation0 [shape = 'u32[]', space=smem, size = 0x4, offset = 0x4, fixed_abs, tag = 'smem constant byte address 0x4 - core index']
  #allocation1 [shape = 'u32[72,128]{1,0:T(1,128)}', space=vmem, size = 0x9000, scoped, tag = 'internal scratch']
  %s0 = inlined_call_operand.vmem [shape: f32[2,4,256], index: 0, kind: input, shape index: {}]
  %s1 = inlined_call_operand.vmem [shape: f32[2,4,256], index: 1, kind: input, shape index: {}]
  %s2 = inlined_call_operand.vmem [shape: f32[2,16,4], index: 2, kind: input, shape index: {}]
  %s3 = inlined_call_operand.vmem [shape: f32[16,1], index: 3, kind: input, shape index: {}]
  %s4 = inlined_call_operand.hbm [shape: f32[2,16,128], index: 4, kind: output, shape index: {}]
  %s5 = sld [smem:[#allocation0]]
  $region49: #{tpu_custom_call.1} parent=0
    _
  %s7 = ssub.s32 1, %s5
  %s8 = scalar_select 0, %s7, %s5
  $region1: #{tpu_custom_call.1} parent=0
    #allocation2 [shape = 'u8[16384]{0}', space=vmem, size = 0x4000, scoped, tag = 'output window, operand 0']
    #allocation3 [shape = 's32[2]{0}', space=sflag, size = 0x8, scoped, tag = 'scoped memory for tpu_custom_call.1']
    %9 = vsyncpa [#allocation3], 0
    %s10 = scalar_lea.sflag [#allocation3], 1
    %11 = vsyncpa %s10, 0
    loop: start=0, step=1, limit=4
    $region2: #{tpu_custom_call.1} parent=1 // loop_pre_header
      _
    $region3: #{tpu_custom_call.1} parent=1 // loop_header
      %s13 = sphi 0, %s17
      %p14 = scmp.ge.s32.totalorder %s13, 4
      %s20 = sphi 0, %s32
      %s21 = sphi 0, %s28
      %s22 = sphi 0, %s20
      %s23 = sphi 0, %s21
      %s24 = sphi 0, %s22
      %s25 = sphi 0, %s23
      %s37 = sphi 0, %s39
      %s40 = sphi 0, %s37
      %s41 = sphi 0, %s40
      %s57 = sphi 0, %s41
      %s67 = sphi 0, %s69
      %s70 = sphi 0, %s67
      %s71 = sphi 0, %s70
      %s87 = sphi 0, %s71
      %s91 = sphi 0, %s91
      %s93 = sphi 0, %s91
      %s94 = sphi 0, %s93
      %s108 = sphi 0, %s94
      %s112 = sphi 0, %s112
      %s114 = sphi 0, %s112
      %s115 = sphi 0, %s114
      %s129 = sphi 0, %s115
      %s137 = sphi 0, %s139
      %s140 = sphi 0, %s137
      %s141 = sphi 0, %s140
      %s157 = sphi 0, %s141
    $region4: #{tpu_custom_call.1} parent=1 // loop_header_branch
      %16 = sbr.rel (%p14) target = $region8
    $region5: #{tpu_custom_call.1} parent=1 // loop_body
      %s18 = ssub.s32 %s13, 1
      %s19 = ssub.s32 %s13, 2
      %s26 = sadd.s32 1, %s21
      %p27 = scmp.ge.s32.totalorder %s26, 1
      %s28 = scalar_select %p27, 0, %s26
      %s29 = sadd.s32 1, %s20
      %s30 = scalar_select %p27, %s29, %s20
      %p31 = scmp.ge.s32.totalorder %s30, 2
      %s32 = scalar_select %p31, 0, %s30
      %s33 = ssub.s32 %s20, %s32
      %s34 = ssub.s32 %s21, %s28
      %s35 = sor.u32 %s33, %s34
      %p36 = scmp.eq.s32.totalorder %s35, 0
      %s38 = sadd.s32 %s37, 1
      %s39 = scalar_select %p36, %s37, %s38
      %p42 = pneg %p36
      %p43 = scmp.eq.s32.totalorder %s13, 1
      %p44 = por %p42, %p43
      %p45 = scmp.ne.s32.totalorder %s37, %s40
      %p46 = scmp.eq.s32.totalorder %s13, 0
      %p47 = por %p45, %p46
      %p48 = scmp.ne.s32.totalorder %s37, %s40
      %p49 = scmp.eq.s32.totalorder %s18, 1
      %p50 = por %p48, %p49
      %p51 = scmp.ne.s32.totalorder %s40, %s41
      %p52 = scmp.eq.s32.totalorder %s18, 0
      %p53 = por %p51, %p52
      %p54 = scmp.ne.s32.totalorder %s40, %s41
      %p55 = scmp.eq.s32.totalorder %s19, 1
      %p56 = por %p54, %p55
      %p58 = scmp.ne.s32.totalorder %s41, %s57
      %p59 = scmp.eq.s32.totalorder %s19, 0
      %p60 = por %p58, %p59
      %s61 = sadd.s32 %s21, 1
      %s62 = sadd.s32 %s28, 1
      %s63 = ssub.s32 %s20, %s32
      %s64 = ssub.s32 %s61, %s62
      %s65 = sor.u32 %s63, %s64
      %p66 = scmp.eq.s32.totalorder %s65, 0
      %s68 = sadd.s32 %s67, 1
      %s69 = scalar_select %p66, %s67, %s68
      %p72 = pneg %p66
      %p73 = scmp.eq.s32.totalorder %s13, 1
      %p74 = por %p72, %p73
      %p75 = scmp.ne.s32.totalorder %s67, %s70
      %p76 = scmp.eq.s32.totalorder %s13, 0
      %p77 = por %p75, %p76
      %p78 = scmp.ne.s32.totalorder %s67, %s70
      %p79 = scmp.eq.s32.totalorder %s18, 1
      %p80 = por %p78, %p79
      %p81 = scmp.ne.s32.totalorder %s70, %s71
      %p82 = scmp.eq.s32.totalorder %s18, 0
      %p83 = por %p81, %p82
      %p84 = scmp.ne.s32.totalorder %s70, %s71
      %p85 = scmp.eq.s32.totalorder %s19, 1
      %p86 = por %p84, %p85
      %p88 = scmp.ne.s32.totalorder %s71, %s87
      %p89 = scmp.eq.s32.totalorder %s19, 0
      %p90 = por %p88, %p89
      %s92 = sadd.s32 %s91, 1
      %p95 = scmp.eq.s32.totalorder %s13, 1
      %p96 = scmp.ne.s32.totalorder %s91, %s93
      %p97 = scmp.eq.s32.totalorder %s13, 0
      %p98 = por %p96, %p97
      %p99 = scmp.ne.s32.totalorder %s91, %s93
      %p100 = scmp.eq.s32.totalorder %s18, 1
      %p101 = por %p99, %p100
      %p102 = scmp.ne.s32.totalorder %s93, %s94
      %p103 = scmp.eq.s32.totalorder %s18, 0
      %p104 = por %p102, %p103
      %p105 = scmp.ne.s32.totalorder %s93, %s94
      %p106 = scmp.eq.s32.totalorder %s19, 1
      %p107 = por %p105, %p106
      %p109 = scmp.ne.s32.totalorder %s94, %s108
      %p110 = scmp.eq.s32.totalorder %s19, 0
      %p111 = por %p109, %p110
      %s113 = sadd.s32 %s112, 1
      %p116 = scmp.eq.s32.totalorder %s13, 1
      %p117 = scmp.ne.s32.totalorder %s112, %s114
      %p118 = scmp.eq.s32.totalorder %s13, 0
      %p119 = por %p117, %p118
      %p120 = scmp.ne.s32.totalorder %s112, %s114
      %p121 = scmp.eq.s32.totalorder %s18, 1
      %p122 = por %p120, %p121
      %p123 = scmp.ne.s32.totalorder %s114, %s115
      %p124 = scmp.eq.s32.totalorder %s18, 0
      %p125 = por %p123, %p124
      %p126 = scmp.ne.s32.totalorder %s114, %s115
      %p127 = scmp.eq.s32.totalorder %s19, 1
      %p128 = por %p126, %p127
      %p130 = scmp.ne.s32.totalorder %s115, %s129
      %p131 = scmp.eq.s32.totalorder %s19, 0
      %p132 = por %p130, %p131
      %s133 = ssub.s32 %s20, %s32
      %s134 = ssub.s32 %s21, %s28
      %s135 = sor.u32 %s133, %s134
      %p136 = scmp.eq.s32.totalorder %s135, 0
      %s138 = sadd.s32 %s137, 1
      %s139 = scalar_select %p136, %s137, %s138
      %p142 = pneg %p136
      %p143 = scmp.eq.s32.totalorder %s13, 1
      %p144 = por %p142, %p143
      %p145 = scmp.ne.s32.totalorder %s137, %s140
      %p146 = scmp.eq.s32.totalorder %s13, 0
      %p147 = por %p145, %p146
      %p148 = scmp.ne.s32.totalorder %s137, %s140
      %p149 = scmp.eq.s32.totalorder %s18, 1
      %p150 = por %p148, %p149
      %p151 = scmp.ne.s32.totalorder %s140, %s141
      %p152 = scmp.eq.s32.totalorder %s18, 0
      %p153 = por %p151, %p152
      %p154 = scmp.ne.s32.totalorder %s140, %s141
      %p155 = scmp.eq.s32.totalorder %s19, 1
      %p156 = por %p154, %p155
      %p158 = scmp.ne.s32.totalorder %s141, %s157
      %p159 = scmp.eq.s32.totalorder %s19, 0
      %p160 = por %p158, %p159
      %p161 = scmp.le.s32.totalorder 1, %s13
      %p162 = scmp.lt.s32.totalorder %s13, 3
      %p163 = pnand %p161, %p162
      %p164 = pneg %p163
      // Predicated region
      $region9: #{tpu_custom_call.1} parent=5 // pred_check
        _
      $region10: #{tpu_custom_call.1} parent=5 // pred_check_branch
        %166 = sbr.rel (%p163) target = $region12
      $region11: #{tpu_custom_call.1} parent=5 // pred_region
        %s167 = ssub.s32 %s13, 1
        // Predicated region
        $region13: #{tpu_custom_call.1} parent=11 // pred_check
          %p168 = pneg %p104
        $region14: #{tpu_custom_call.1} parent=11 // pred_check_branch
          %170 = sbr.rel (%p168) target = $region16
        $region15: #{tpu_custom_call.1} parent=11 // pred_region
          _
        $region16: #{tpu_custom_call.1} parent=11 // pred_fallthru
          _
        // Predicated region
        $region17: #{tpu_custom_call.1} parent=11 // pred_check
          %p171 = pneg %p125
        $region18: #{tpu_custom_call.1} parent=11 // pred_check_branch
          %173 = sbr.rel (%p171) target = $region20
        $region19: #{tpu_custom_call.1} parent=11 // pred_region
          _
        $region20: #{tpu_custom_call.1} parent=11 // pred_fallthru
          _
      $region12: #{tpu_custom_call.1} parent=5 // pred_fallthru
        _
      %p174 = scmp.lt.s32.totalorder %s13, 2
      // Predicated region
      $region21: #{tpu_custom_call.1} parent=5 // pred_check
        %p175 = pneg %p174
      $region22: #{tpu_custom_call.1} parent=5 // pred_check_branch
        %177 = sbr.rel (%p175) target = $region24
      $region23: #{tpu_custom_call.1} parent=5 // pred_region
        // Predicated region
        $region25: #{tpu_custom_call.1} parent=23 // pred_check
          %p178 = pneg %p47
        $region26: #{tpu_custom_call.1} parent=23 // pred_check_branch
          %180 = sbr.rel (%p178) target = $region28
        $region27: #{tpu_custom_call.1} parent=23 // pred_region
          %p181 = scmp.lt.s32.totalorder %s20, 1
          %s182 = scalar_select %p181, %s20, 1
          %p183 = scmp.lt.s32.totalorder %s21, 1
          %s184 = scalar_select %p183, %s21, 1
          %s185 = smul.addr %s182, 2
          %s186 = sadd.s32 %s184, %s185
          %s187 = smul.addr %s186, 4
          %s188 = scalar_lea.vmem %s0, %s187
        $region28: #{tpu_custom_call.1} parent=23 // pred_fallthru
          _
        // Predicated region
        $region29: #{tpu_custom_call.1} parent=23 // pred_check
          %p189 = pneg %p77
        $region30: #{tpu_custom_call.1} parent=23 // pred_check_branch
          %191 = sbr.rel (%p189) target = $region32
        $region31: #{tpu_custom_call.1} parent=23 // pred_region
          %s192 = sadd.s32 %s21, 1
          %p193 = scmp.lt.s32.totalorder %s20, 1
          %s194 = scalar_select %p193, %s20, 1
          %p195 = scmp.lt.s32.totalorder %s192, 1
          %s196 = scalar_select %p195, %s192, 1
          %s197 = smul.addr %s194, 2
          %s198 = sadd.s32 %s196, %s197
          %s199 = smul.addr %s198, 4
          %s200 = scalar_lea.vmem %s1, %s199
          %s201 = sadd.s32 %s21, 1
        $region32: #{tpu_custom_call.1} parent=23 // pred_fallthru
          _
      $region24: #{tpu_custom_call.1} parent=5 // pred_fallthru
        _
      %p202 = scmp.le.s32.totalorder 1, %s13
      %p203 = scmp.lt.s32.totalorder %s13, 3
      %p204 = pnand %p202, %p203
      %p205 = pneg %p204
      // Predicated region
      $region33: #{tpu_custom_call.1} parent=5 // pred_check
        _
      $region34: #{tpu_custom_call.1} parent=5 // pred_check_branch
        %207 = sbr.rel (%p204) target = $region36
      $region35: #{tpu_custom_call.1} parent=5 // pred_region
        %s208 = ssub.s32 %s13, 1
        %p209 = scmp.lt.s32.totalorder %s22, 1
        %s210 = scalar_select %p209, %s22, 1
        %p211 = scmp.lt.s32.totalorder %s23, 1
        %s212 = scalar_select %p211, %s23, 1
        %s213 = smul.addr %s210, 2
        %s214 = sadd.s32 %s212, %s213
        %s215 = smul.addr %s214, 4
        %s216 = scalar_lea.vmem %s0, %s215
        %p217 = pneg %p53
        %p218 = pneg %p50
        %s219 = sadd.s32 %s23, 1
        %p220 = scmp.lt.s32.totalorder %s22, 1
        %s221 = scalar_select %p220, %s22, 1
        %p222 = scmp.lt.s32.totalorder %s219, 1
        %s223 = scalar_select %p222, %s219, 1
        %s224 = smul.addr %s221, 2
        %s225 = sadd.s32 %s223, %s224
        %s226 = smul.addr %s225, 4
        %s227 = scalar_lea.vmem %s1, %s226
        %p228 = pneg %p83
        %p229 = pneg %p80
        %p230 = pneg %p104
        %p231 = pneg %p101
        %p232 = pneg %p125
        %p233 = pneg %p122
        %p234 = pneg %p153
        %p235 = pneg %p150
        %s236 = sand.u32 %s140, 1
        %s237 = scalar_lea.sflag [#allocation3], %s236
        %s238 = sand.u32 %s140, 1
        %s239 = smul.addr %s238, 16
        %s240 = scalar_lea.vmem [#allocation2], %s239
        %p241 = scmp.lt.s32.totalorder %s22, 1
        %s242 = scalar_select %p241, %s22, 1
        %p243 = scmp.lt.s32.totalorder %s23, 1
        %s244 = scalar_select %p243, %s23, 1
        %s245 = smul.addr %s242, 2
        %s246 = sadd.s32 %s244, %s245
        %s247 = smul.addr %s246, 4
        %s248 = scalar_lea.vmem %s0, %s247
        %s249 = sadd.s32 %s23, 1
        %p250 = scmp.lt.s32.totalorder %s22, 1
        %s251 = scalar_select %p250, %s22, 1
        %p252 = scmp.lt.s32.totalorder %s249, 1
        %s253 = scalar_select %p252, %s249, 1
        %s254 = smul.addr %s251, 2
        %s255 = sadd.s32 %s253, %s254
        %s256 = smul.addr %s255, 4
        %s257 = scalar_lea.vmem %s1, %s256
        %s258 = sadd.s32 %s23, 1
        %v259 = vld [vmem:[%s248] sm:$0xf]
        %v260 = vld [vmem:[%s257] sm:$0xf]
        %v261 = vld [vmem:[%s2] sm:$0xff]
        %v262 = vld [vmem:[%s2 + $0x8] sm:$0xff]
        %s263 = scalar_lea.vmem %s2, 16
        %v264 = vld [vmem:[%s263] sm:$0xff]
        %v265 = vld [vmem:[%s263 + $0x8] sm:$0xff]
        %vm266 = vcmask 31744
        %v268 = vsel %vm266, %v264, 0
        %v271 = vsel %vm266, %v265, 0
        %vm273 = vcmask 1043456
        %v275 = vsel %vm273, %v259, 0
        %277 = vmatpush.msra.mxu0 0.0
        %278 = vmatpush.msra.mxu0 0.0
        %279 = vmatpush.msra.mxu0 0.0
        %280 = vmatpush.msra.mxu0 0.0
        %281 = vmatpush.msra.mxu0 0.0
        %282 = vmatpush.msra.mxu0 0.0
        %283 = vmatpush.msra.mxu0 0.0
        %284 = vmatpush.msra.mxu0 0.0
        %285 = vmatpush.msra.mxu0 0.0
        %286 = vmatpush.msra.mxu0 0.0
        %287 = vmatpush.msra.mxu0 0.0
        %288 = vmatpush.msra.mxu0 0.0
        %289 = vmatpush.msra.mxu0 0.0
        %290 = vmatpush.msra.mxu0 0.0
        %291 = vmatpush.msra.mxu0 0.0
        %292 = vmatpush.msra.mxu0 %v275
        %293 = vmatmul.f32.gmra.mxu0 %v268
        %v294 = vpop.f32.mrf.mxu0
        %v295 = vadd.f32 0.0, %v294
        %296 = vmatmul.f32.gmra.mxu0 %v271
        %v297 = vpop.f32.mrf.mxu0
        %v298 = vadd.f32 0.0, %v297
        %299 = vdwg.mxu0
        %301 = vrot.lane.b32.xlu0 %v259, 127
        %v302 = vpop.permute.xlu0 %301
        %303 = vrot.lane.b32.xlu0 %v260, 127
        %v304 = vpop.permute.xlu0 %303
        %vm305 = vcmask 1039360
        %v306 = vsel %vm305, %v302, %v304
        %v308 = vsel %vm266, %v261, 0
        %v311 = vsel %vm266, %v262, 0
        %v313 = vsel %vm273, %v306, 0
        %315 = vmatpush.msra.mxu0 0.0
        %316 = vmatpush.msra.mxu0 0.0
        %317 = vmatpush.msra.mxu0 0.0
        %318 = vmatpush.msra.mxu0 0.0
        %319 = vmatpush.msra.mxu0 0.0
        %320 = vmatpush.msra.mxu0 0.0
        %321 = vmatpush.msra.mxu0 0.0
        %322 = vmatpush.msra.mxu0 0.0
        %323 = vmatpush.msra.mxu0 0.0
        %324 = vmatpush.msra.mxu0 0.0
        %325 = vmatpush.msra.mxu0 0.0
        %326 = vmatpush.msra.mxu0 0.0
        %327 = vmatpush.msra.mxu0 0.0
        %328 = vmatpush.msra.mxu0 0.0
        %329 = vmatpush.msra.mxu0 0.0
        %330 = vmatpush.msra.mxu0 %v313
        %331 = vmatmul.f32.gmra.mxu0 %v308
        %v332 = vpop.f32.mrf.mxu0
        %v333 = vadd.f32 %v295, %v332
        %334 = vmatmul.f32.gmra.mxu0 %v311
        %v335 = vpop.f32.mrf.mxu0
        %v336 = vadd.f32 %v298, %v335
        %337 = vdwg.mxu0
        %v338 = vld [vmem:[%s3] sm:$0xff]
        %v339 = vld [vmem:[%s3 + $0x8] sm:$0xff]
        %341 = vset.pattern.permute.xlu0 0
        %342 = vperm.xlu0 %341, %v338
        %v343 = vpop.permute.xlu0 %342
        %346 = vset.pattern.permute.xlu0 0
        %347 = vperm.xlu0 %346, %v339
        %v348 = vpop.permute.xlu0 %347
        %v350 = vadd.f32 %v333, %v343
        %v351 = vadd.f32 %v336, %v348
        %352 = vst [vmem:[%s240] sm:$0xff] %v350
        %353 = vst [vmem:[%s240 + $0x8] sm:$0xff] %v351
        %s354 = sand.u32 %s140, 1
        %s355 = scalar_lea.sflag [#allocation3], %s354
        %s356 = sand.u32 %s140, 1
        %s357 = smul.addr %s356, 16
        %s358 = scalar_lea.vmem [#allocation2], %s357
        // Predicated region
        $region37: #{tpu_custom_call.1} parent=35 // pred_check
          %p359 = pneg %p150
        $region38: #{tpu_custom_call.1} parent=35 // pred_check_branch
          %361 = sbr.rel (%p359) target = $region40
        $region39: #{tpu_custom_call.1} parent=35 // pred_region
          %363 = vsyncadd %s355, 0
          %s364 = smul.addr %s22, 2
          %s365 = sadd.s32 %s23, %s364
          %s366 = smul.addr %s365, 8
          %s367 = scalar_lea.hbm %s4, %s366
          %s368 = sshll.u32 %s358, 4
          %s369 = int_to_ptr.vmem [resolvable:$true] %s368
          %s370 = sshll.u32 %s367, 4
          %s371 = int_to_ptr.hbm [resolvable:$true] %s370
          %376 = dma.vmem_to_hbm [thread:$0]  %s369, 256, %s371, %s355, 128, 128, 8
        $region40: #{tpu_custom_call.1} parent=35 // pred_fallthru
          _
      $region36: #{tpu_custom_call.1} parent=5 // pred_fallthru
        _
      %p377 = scmp.le.s32.totalorder 2, %s13
      // Predicated region
      $region41: #{tpu_custom_call.1} parent=5 // pred_check
        %p378 = pneg %p377
      $region42: #{tpu_custom_call.1} parent=5 // pred_check_branch
        %380 = sbr.rel (%p378) target = $region44
      $region43: #{tpu_custom_call.1} parent=5 // pred_region
        %s381 = ssub.s32 %s13, 2
        // Predicated region
        $region45: #{tpu_custom_call.1} parent=43 // pred_check
          %p382 = pneg %p156
        $region46: #{tpu_custom_call.1} parent=43 // pred_check_branch
          %384 = sbr.rel (%p382) target = $region48
        $region47: #{tpu_custom_call.1} parent=43 // pred_region
          %s385 = sand.u32 %s141, 1
          %s386 = scalar_lea.sflag [#allocation3], %s385
          %s387 = sand.u32 %s141, 1
          %s388 = smul.addr %s387, 16
          %s389 = scalar_lea.vmem [#allocation2], %s388
          %391 = dma.done %s386, 256
        $region48: #{tpu_custom_call.1} parent=43 // pred_fallthru
          _
      $region44: #{tpu_custom_call.1} parent=5 // pred_fallthru
        _
    $region6: #{tpu_custom_call.1} parent=1 // loop_footer
      %s17 = sadd.s32 1, %s13
    $region7: #{tpu_custom_call.1} parent=1 // loop_footer_branch
      %12 = sbr.rel target = $region3
    $region8: #{tpu_custom_call.1} parent=1 // loop_exit
      _
    %392 = vsyncpa [#allocation3], 1
    %s393 = scalar_lea.sflag [#allocation3], 1
    %394 = vsyncpa %s393, 1

</llo_original>
